<compile_context>
chip_gen: v7x
topology: tpu7x:2x2x1
jax: 0.10.0
libtpu: 0.0.40
codegen_flags: <defaults>
</compile_context>

<pallas_src>
import functools

import jax
import jax.numpy as jnp
from jax.experimental import pallas as pl
from jax.experimental.pallas import tpu as pltpu

LANE = 128


def _round_up(x, m):
    return ((x + m - 1) // m) * m


def _vmem_limit_bytes():
    """Scoped-VMEM budget: ~3/4 of physical VMEM, floor 32 MiB, cap 96 MiB."""
    phys = 64 * 1024 * 1024
    try:
        phys = int(pltpu.get_tpu_info().vmem_capacity_bytes)
    except Exception:
        pass
    return max(32 * 1024 * 1024, min(96 * 1024 * 1024, (phys * 3) // 4))


def _plan_tiling(n128, num_rel, h_pad, vmem_limit):
    """Pick the node tile (and whether the hW stack can stay VMEM-resident) so
    the aggregation kernel's double-buffered footprint fits the budget."""
    budget = int(vmem_limit * 0.7)
    for tile in (1024, 512, 256, 128):
        if tile > n128:
            continue
        # keep >= 2 dst tiles when possible (v7x megacore split of the
        # "parallel" axis), unless the graph fits a single 128 tile anyway.
        if tile > max(LANE, n128 // 2):
            continue
        n_pad = _round_up(n128, tile)
        a_bytes = 2 * num_rel * tile * tile * 2        # A tiles, bf16, x2 bufs
        io_bytes = 2 * 2 * tile * h_pad * 4            # self + out tiles, f32, x2
        acc_bytes = tile * h_pad * 4                   # accumulator scratch
        hw_resident_bytes = 2 * num_rel * n_pad * h_pad * 2
        hw_streamed_bytes = 2 * num_rel * tile * h_pad * 2
        base = a_bytes + io_bytes + acc_bytes
        if base + hw_resident_bytes <= budget:
            return tile, True
        if base + hw_streamed_bytes <= budget:
            return tile, False
    return 128, False


# ----------------------------------------------------------------------------
# Kernels
# ----------------------------------------------------------------------------
def _encoder_kernel(x_ref, w_ref, b_ref, out_ref):
    """One row-tile of h = x @ W_enc + b_enc."""
    out_ref[...] = (
        jnp.dot(x_ref[...], w_ref[...], preferred_element_type=jnp.float32)
        + b_ref[...]
    ).astype(out_ref.dtype)


def _transform_kernel(h_ref, w_root_ref, w_rel_ref, b_ref, self_ref, hw_ref):
    """Per node tile: self = h @ W_root + b (f32) and hW[r] = h @ W_rel[r] (bf16)."""
    f32 = jnp.float32
    h = h_ref[...].astype(f32)
    self_ref[...] = jnp.dot(h, w_root_ref[...], preferred_element_type=f32) + b_ref[...]
    num_rel = w_rel_ref.shape[0]
    for r in range(num_rel):  # static, small relation count
        hw_ref[r] = jnp.dot(h, w_rel_ref[r], preferred_element_type=f32).astype(
            hw_ref.dtype)


def _aggregate_kernel(a_ref, hw_ref, self_ref, out_ref, acc_ref, *,
                      num_rel, tile, apply_relu, hw_resident):
    """One (dst-tile, src-tile) step of out = self + sum_r A_r @ hW_r.

    Grid: (num_dst_tiles [parallel], num_src_tiles [arbitrary, reduction]).
    acc_ref is a (tile, H) f32 accumulator for the current dst tile.
    """
    f32 = jnp.float32
    k = pl.program_id(1)

    @pl.when(k == 0)
    def _init():
        acc_ref[...] = jnp.zeros_like(acc_ref)

    if hw_resident:
        src0 = pl.multiple_of(k * tile, tile)

    contrib = None
    for r in range(num_rel):  # static, small relation count
        hw_blk = hw_ref[r, pl.ds(src0, tile), :] if hw_resident else hw_ref[r]
        m = jnp.dot(a_ref[r], hw_blk, preferred_element_type=f32)  # bf16 MXU, f32 acc
        contrib = m if contrib is None else contrib + m
    acc_ref[...] += contrib

    @pl.when(k == pl.num_programs(1) - 1)
    def _finalize():
        out = self_ref[...] + acc_ref[...]
        if apply_relu:
            out = jnp.maximum(out, 0.0)
        out_ref[...] = out.astype(out_ref.dtype)


def _pool_head_kernel(p_ref, h_ref, w_lin_ref, b_lin_ref, w_clf_ref, b_clf_ref,
                      out_ref, acc_ref):
    """Tiled global_add_pool (P @ h2) then Linear/ReLU + classifier at the end."""
    f32 = jnp.float32
    i = pl.program_id(0)

    @pl.when(i == 0)
    def _init():
        acc_ref[...] = jnp.zeros_like(acc_ref)

    acc_ref[...] += jnp.dot(p_ref[...], h_ref[...], preferred_element_type=f32)

    @pl.when(i == pl.num_programs(0) - 1)
    def _finalize():
        y = jnp.dot(acc_ref[...], w_lin_ref[...], preferred_element_type=f32) + b_lin_ref[...]
        y = jnp.maximum(y, 0.0)
        out_ref[...] = (
            jnp.dot(y, w_clf_ref[...], preferred_element_type=f32) + b_clf_ref[...]
        )


# ----------------------------------------------------------------------------
# pallas_call wrappers
# ----------------------------------------------------------------------------
def _encoder(x, w, b, tile, vmem_limit):
    n_pad, in_pad = x.shape
    h_pad = w.shape[1]
    return pl.pallas_call(
        _encoder_kernel,
        out_shape=jax.ShapeDtypeStruct((n_pad, h_pad), jnp.float32),
        grid_spec=pltpu.PrefetchScalarGridSpec(
            num_scalar_prefetch=0,
            grid=(n_pad // tile,),
            in_specs=[
                pl.BlockSpec((tile, in_pad), lambda i: (i, 0)),
                pl.BlockSpec((in_pad, h_pad), lambda i: (0, 0)),
                pl.BlockSpec((1, h_pad), lambda i: (0, 0)),
            ],
            out_specs=pl.BlockSpec((tile, h_pad), lambda i: (i, 0)),
        ),
        compiler_params=pltpu.CompilerParams(
            dimension_semantics=("parallel",),
            vmem_limit_bytes=vmem_limit,
        ),
    )(x, w, b)


def _relation_transform(h, w_root, w_rel, b, tile, vmem_limit):
    """self = h @ W_root + b (f32) and hW stack (R, N, H) in bf16."""
    n_pad, h_pad = h.shape
    num_rel = w_rel.shape[0]
    return pl.pallas_call(
        _transform_kernel,
        out_shape=(
            jax.ShapeDtypeStruct((n_pad, h_pad), jnp.float32),
            jax.ShapeDtypeStruct((num_rel, n_pad, h_pad), jnp.bfloat16),
        ),
        grid_spec=pltpu.PrefetchScalarGridSpec(
            num_scalar_prefetch=0,
            grid=(n_pad // tile,),
            in_specs=[
                pl.BlockSpec((tile, h_pad), lambda i: (i, 0)),
                pl.BlockSpec((h_pad, h_pad), lambda i: (0, 0)),
                pl.BlockSpec((num_rel, h_pad, h_pad), lambda i: (0, 0, 0)),
                pl.BlockSpec((1, h_pad), lambda i: (0, 0)),
            ],
            out_specs=[
                pl.BlockSpec((tile, h_pad), lambda i: (i, 0)),
                pl.BlockSpec((num_rel, tile, h_pad), lambda i: (0, i, 0)),
            ],
        ),
        compiler_params=pltpu.CompilerParams(
            dimension_semantics=("parallel",),
            vmem_limit_bytes=vmem_limit,
        ),
    )(h, w_root, w_rel, b)


def _aggregate(a_bf16, hw, self_term, tile, *, apply_relu, hw_resident, vmem_limit):
    num_rel, n_pad, _ = a_bf16.shape
    h_pad = hw.shape[2]
    n_tiles = n_pad // tile
    kernel = functools.partial(
        _aggregate_kernel, num_rel=num_rel, tile=tile,
        apply_relu=apply_relu, hw_resident=hw_resident)
    if hw_resident:
        hw_spec = pl.BlockSpec((num_rel, n_pad, h_pad), lambda i, k: (0, 0, 0))
    else:
        hw_spec = pl.BlockSpec((num_rel, tile, h_pad), lambda i, k: (0, k, 0))
    return pl.pallas_call(
        kernel,
        out_shape=jax.ShapeDtypeStruct((n_pad, h_pad), jnp.float32),
        grid_spec=pltpu.PrefetchScalarGridSpec(
            num_scalar_prefetch=0,
            grid=(n_tiles, n_tiles),  # (dst tiles, src tiles); reduction last
            in_specs=[
                pl.BlockSpec((num_rel, tile, tile), lambda i, k: (0, i, k)),  # A bf16
                hw_spec,                                                      # hW bf16
                pl.BlockSpec((tile, h_pad), lambda i, k: (i, 0)),             # self term
            ],
            out_specs=pl.BlockSpec((tile, h_pad), lambda i, k: (i, 0)),
            scratch_shapes=[pltpu.VMEM((tile, h_pad), jnp.float32)],
        ),
        compiler_params=pltpu.CompilerParams(
            dimension_semantics=("parallel", "arbitrary"),
            vmem_limit_bytes=vmem_limit,
        ),
    )(a_bf16, hw, self_term)


def _pool_head(pool_mat, h2, w_lin, b_lin, w_clf, b_clf, tile, vmem_limit):
    g_pad, n_pad = pool_mat.shape
    h_pad = h2.shape[1]
    out_pad = w_clf.shape[1]
    n_tiles = n_pad // tile
    return pl.pallas_call(
        _pool_head_kernel,
        out_shape=jax.ShapeDtypeStruct((g_pad, out_pad), jnp.float32),
        grid_spec=pltpu.PrefetchScalarGridSpec(
            num_scalar_prefetch=0,
            grid=(n_tiles,),
            in_specs=[
                pl.BlockSpec((g_pad, tile), lambda i: (0, i)),
                pl.BlockSpec((tile, h_pad), lambda i: (i, 0)),
                pl.BlockSpec((h_pad, h_pad), lambda i: (0, 0)),
                pl.BlockSpec((1, h_pad), lambda i: (0, 0)),
                pl.BlockSpec((h_pad, out_pad), lambda i: (0, 0)),
                pl.BlockSpec((1, out_pad), lambda i: (0, 0)),
            ],
            out_specs=pl.BlockSpec((g_pad, out_pad), lambda i: (0, 0)),
            scratch_shapes=[pltpu.VMEM((g_pad, h_pad), jnp.float32)],
        ),
        compiler_params=pltpu.CompilerParams(
            dimension_semantics=("arbitrary",),
            vmem_limit_bytes=vmem_limit,
        ),
    )(pool_mat, h2, w_lin, b_lin, w_clf, b_clf)


# ----------------------------------------------------------------------------
# Full forward
# ----------------------------------------------------------------------------
def rgcn_net_graph_forward(x, edge_src, edge_dst, edge_type, batch, params,
                           *, num_relations, num_graphs):
    """Builds padded dense per-relation adjacency + pooling matrix (JAX glue),
    then runs the tiled Pallas kernels."""
    N, in_ch = x.shape
    R = num_relations
    G = num_graphs
    H = params["w_enc"].shape[1]
    OUT = params["w_clf"].shape[1]

    in_pad = _round_up(in_ch, LANE)
    h_pad = _round_up(H, LANE)
    out_pad = _round_up(OUT, LANE)
    g_pad = _round_up(G, 8)

    vmem_limit = _vmem_limit_bytes()
    n128 = _round_up(N, LANE)
    tile, hw_resident = _plan_tiling(n128, R, h_pad, vmem_limit)
    n_pad = _round_up(n128, tile)

    def pad2(a, r, c):
        return jnp.pad(a, ((0, r - a.shape[0]), (0, c - a.shape[1])))

    def pad3(a, r, c):
        return jnp.pad(a, ((0, 0), (0, r - a.shape[1]), (0, c - a.shape[2])))

    # --- padded inputs / parameters (zero padding keeps the math exact) ---
    x_p = pad2(x.astype(jnp.float32), n_pad, in_pad)
    w_enc = pad2(params["w_enc"], in_pad, h_pad)
    b_enc = pad2(params["b_enc"], 1, h_pad)
    w_root1 = pad2(params["w_root1"], h_pad, h_pad)
    w_rel1 = pad3(params["w_rel1"], h_pad, h_pad)
    b1 = pad2(params["b1"], 1, h_pad)
    w_root2 = pad2(params["w_root2"], h_pad, h_pad)
    w_rel2 = pad3(params["w_rel2"], h_pad, h_pad)
    b2 = pad2(params["b2"], 1, h_pad)
    w_lin = pad2(params["w_lin"], h_pad, h_pad)
    b_lin = pad2(params["b_lin"], 1, h_pad)
    w_clf = pad2(params["w_clf"], h_pad, out_pad)
    b_clf = pad2(params["b_clf"], 1, out_pad)

    # --- dense normalized adjacency: A[r, dst, src], PyG mean aggregation ---
    A = jnp.zeros((R, n_pad, n_pad), jnp.float32)
    A = A.at[edge_type.astype(jnp.int32),
             edge_dst.astype(jnp.int32),
             edge_src.astype(jnp.int32)].add(1.0)
    deg = jnp.sum(A, axis=2, keepdims=True)
    A = (A / jnp.maximum(deg, 1.0)).astype(jnp.bfloat16)  # bf16 stream, f32 acc

    # --- pooling matrix P[g, n] = 1 iff node n belongs to graph g ---
    batch_p = jnp.concatenate(
        [batch.astype(jnp.int32),
         jnp.full((n_pad - N,), -1, jnp.int32)]  # phantom nodes match no graph
    )
    P = (batch_p[None, :] == jnp.arange(g_pad, dtype=jnp.int32)[:, None]).astype(
        jnp.float32)

    # --- kernels ---
    h = _encoder(x_p, w_enc, b_enc, tile, vmem_limit)

    self1, hw1 = _relation_transform(h, w_root1, w_rel1, b1, tile, vmem_limit)
    h1 = _aggregate(A, hw1, self1, tile, apply_relu=True,
                    hw_resident=hw_resident, vmem_limit=vmem_limit)

    self2, hw2 = _relation_transform(h1, w_root2, w_rel2, b2, tile, vmem_limit)
    h2 = _aggregate(A, hw2, self2, tile, apply_relu=False,
                    hw_resident=hw_resident, vmem_limit=vmem_limit)

    out = _pool_head(P, h2, w_lin, b_lin, w_clf, b_clf, tile, vmem_limit)
    return out[:G, :OUT]


# ----------------------------------------------------------------------------
# Pure-JAX f32 reference (same math, no padding / no bf16)
# ----------------------------------------------------------------------------
def reference_forward(x, edge_src, edge_dst, edge_type, batch, params,
                      *, num_relations, num_graphs):
    N = x.shape[0]
    A = jnp.zeros((num_relations, N, N), jnp.float32)
    A = A.at[edge_type, edge_dst, edge_src].add(1.0)
    A = A / jnp.maximum(jnp.sum(A, axis=2, keepdims=True), 1.0)
    P = (batch[None, :].astype(jnp.int32)
         == jnp.arange(num_graphs, dtype=jnp.int32)[:, None]).astype(jnp.float32)

    h = x @ params["w_enc"] + params["b_enc"]

    def conv(h, w_root, w_rel, b):
        agg = sum(A[r] @ h @ w_rel[r] for r in range(num_relations))
        return h @ w_root + agg + b

    h1 = jax.nn.relu(conv(h, params["w_root1"], params["w_rel1"], params["b1"]))
    h2 = conv(h1, params["w_root2"], params["w_rel2"], params["b2"])
    pooled = P @ h2
    y = jax.nn.relu(pooled @ params["w_lin"] + params["b_lin"])
    return y @ params["w_clf"] + params["b_clf"]


# ----------------------------------------------------------------------------
# Parameter init (shapes match the PyTorch module; weights stored [in, out])
# ----------------------------------------------------------------------------
def init_params(key, in_channels, hidden, out_channels, num_relations):
    ks = jax.random.split(key, 12)

    def lin(k, fan_in, fan_out):
        s = 1.0 / jnp.sqrt(jnp.float32(fan_in))
        kw, kb = jax.random.split(k)
        w = jax.random.uniform(kw, (fan_in, fan_out), jnp.float32, -s, s)
        b = jax.random.uniform(kb, (1, fan_out), jnp.float32, -s, s)
        return w, b

    w_enc, b_enc = lin(ks[0], in_channels, hidden)

    s = 1.0 / jnp.sqrt(jnp.float32(hidden))
    w_root1 = jax.random.uniform(ks[1], (hidden, hidden), jnp.float32, -s, s)
    w_rel1 = jax.random.uniform(ks[2], (num_relations, hidden, hidden),
                                jnp.float32, -s, s)
    b1 = jnp.zeros((1, hidden), jnp.float32)

    w_root2 = jax.random.uniform(ks[3], (hidden, hidden), jnp.float32, -s, s)
    w_rel2 = jax.random.uniform(ks[4], (num_relations, hidden, hidden),
                                jnp.float32, -s, s)
    b2 = jnp.zeros((1, hidden), jnp.float32)

    w_lin, b_lin = lin(ks[5], hidden, hidden)
    w_clf, b_clf = lin(ks[6], hidden, out_channels)

    return dict(
        w_enc=w_enc, b_enc=b_enc,
        w_root1=w_root1, w_rel1=w_rel1, b1=b1,
        w_root2=w_root2, w_rel2=w_rel2, b2=b2,
        w_lin=w_lin, b_lin=b_lin,
        w_clf=w_clf, b_clf=b_clf,
    )


if __name__ == "__main__":
    # Small, deterministic synthetic graph batch (launch-overhead bound at this
    # size; the tiling/streaming structure pays off at N in the thousands).
    N = 16            # total nodes across the batch
    IN_CH = 4         # raw node-feature dim (float -> encoder Linear path)
    HIDDEN = 32
    OUT_CH = 8        # number of graph classes
    NUM_REL = 3
    NUM_GRAPHS = 2
    NUM_EDGES = 40

    key = jax.random.PRNGKey(0)
    k_x, k_src, k_dst, k_et, k_par = jax.random.split(key, 5)

    x = jax.random.normal(k_x, (N, IN_CH), jnp.float32)
    edge_src = jax.random.randint(k_src, (NUM_EDGES,), 0, N)
    edge_dst = jax.random.randint(k_dst, (NUM_EDGES,), 0, N)
    edge_type = jax.random.randint(k_et, (NUM_EDGES,), 0, NUM_REL)
    batch = jnp.concatenate(
        [jnp.zeros((N // 2,), jnp.int32), jnp.ones((N - N // 2,), jnp.int32)]
    )

    params = init_params(k_par, IN_CH, HIDDEN, OUT_CH, NUM_REL)

    # TODO(synk): integer (torch.int64) node-feature path uses AtomEncoder
    # (embedding lookups); only the float-feature Linear-encoder path is
    # implemented here.

    out = rgcn_net_graph_forward(
        x, edge_src, edge_dst, edge_type, batch, params,
        num_relations=NUM_REL, num_graphs=NUM_GRAPHS,
    )
    out = jax.block_until_ready(out)
    assert out.shape == (NUM_GRAPHS, OUT_CH)
    assert jnp.all(jnp.isfinite(out))

    ref = reference_forward(
        x, edge_src, edge_dst, edge_type, batch, params,
        num_relations=NUM_REL, num_graphs=NUM_GRAPHS,
    )
    ref = jax.block_until_ready(ref)
    max_err = float(jnp.max(jnp.abs(out - ref)))
    assert max_err < 5e-2, f"kernel deviates from f32 reference: max|err|={max_err}"

    print("KERNEL_OK")
</pallas_src>

<mosaic_0001>
module attributes {stable_mosaic.version = 11 : i64} {
  func.func @_encoder_kernel(%arg0: i32, %arg1: memref<128x128xf32, #tpu.memory_space<vmem>>, %arg2: memref<128x128xf32, #tpu.memory_space<vmem>>, %arg3: memref<1x128xf32, #tpu.memory_space<vmem>>, %arg4: memref<128x128xf32, #tpu.memory_space<vmem>>) attributes {dimension_semantics = [#tpu.dimension_semantics<parallel>], iteration_bounds = array<i64: 1>, scalar_prefetch = 0 : i64, scratch_operands = 0 : i64, tpu.core_type = #tpu.core_type<tc>, window_params = [{transform_indices = @transform_0, window_bounds = array<i64: 128, 128>}, {pipeline_mode = #tpu.pipeline_mode<synchronous>, transform_indices = @transform_1, window_bounds = array<i64: 128, 128>}, {pipeline_mode = #tpu.pipeline_mode<synchronous>, transform_indices = @transform_2, window_bounds = array<i64: 1, 128>}, {transform_indices = @transform_3, window_bounds = array<i64: 128, 128>}]} {
    %c0 = arith.constant 0 : index
    %c0_0 = arith.constant 0 : index
    %0 = vector.load %arg1[%c0, %c0_0] : memref<128x128xf32, #tpu.memory_space<vmem>>, vector<128x128xf32>
    %c0_1 = arith.constant 0 : index
    %c0_2 = arith.constant 0 : index
    %1 = vector.load %arg2[%c0_1, %c0_2] : memref<128x128xf32, #tpu.memory_space<vmem>>, vector<128x128xf32>
    %cst = arith.constant dense<0.000000e+00> : vector<128x128xf32>
    %2 = tpu.matmul %0, %1, %cst {dimension_numbers = #tpu.dot_dimension_numbers<[1], [0], [0], [1], [0, 0, 1, 1], [], []>} : vector<128x128xf32>, vector<128x128xf32>, vector<128x128xf32> -> vector<128x128xf32>
    %c0_3 = arith.constant 0 : index
    %c0_4 = arith.constant 0 : index
    %3 = vector.load %arg3[%c0_3, %c0_4] : memref<1x128xf32, #tpu.memory_space<vmem>>, vector<1x128xf32>
    %4 = vector.broadcast %3 : vector<1x128xf32> to vector<128x128xf32>
    %5 = arith.addf %2, %4 : vector<128x128xf32>
    %c0_5 = arith.constant 0 : index
    %c0_6 = arith.constant 0 : index
    %6 = vector.load %arg4[%c0_5, %c0_6] : memref<128x128xf32, #tpu.memory_space<vmem>>, vector<128x128xf32>
    tpu.vector_store %arg4[%c0_5, %c0_6], %5 {strides = array<i32>} : memref<128x128xf32, #tpu.memory_space<vmem>>, vector<128x128xf32>,
    return
  }
  func.func @transform_0(%arg0: i32) -> (i32, i32) {
    %c0_i32 = arith.constant 0 : i32
    %c0_i32_0 = arith.constant 0 : i32
    return %arg0, %c0_i32 : i32, i32
  }
  func.func @transform_1(%arg0: i32) -> (i32, i32) {
    %c0_i32 = arith.constant 0 : i32
    %c0_i32_0 = arith.constant 0 : i32
    %c0_i32_1 = arith.constant 0 : i32
    return %c0_i32, %c0_i32_0 : i32, i32
  }
  func.func @transform_2(%arg0: i32) -> (i32, i32) {
    %c0_i32 = arith.constant 0 : i32
    %c0_i32_0 = arith.constant 0 : i32
    %c0_i32_1 = arith.constant 0 : i32
    return %c0_i32, %c0_i32_0 : i32, i32
  }
  func.func @transform_3(%arg0: i32) -> (i32, i32) {
    %c0_i32 = arith.constant 0 : i32
    %c0_i32_0 = arith.constant 0 : i32
    return %arg0, %c0_i32 : i32, i32
  }
}

</mosaic_0001>

<llo_original>
// kernel: tpu_custom_call.1
$region0: #{tpu_custom_call.1}
  #allocation0 [shape = 'u32[]', space=smem, size = 0x4, offset = 0x4, fixed_abs, tag = 'smem constant byte address 0x4 - core index']
  #allocation1 [shape = 'u32[144,128]{1,0:T(1,128)}', space=vmem, size = 0x12000, scoped, tag = 'internal scratch']
  %s0 = inlined_call_operand.hbm [shape: f32[128,128], index: 0, kind: input, shape index: {}]
  %s1 = inlined_call_operand.hbm [shape: f32[128,128], index: 1, kind: input, shape index: {}]
  %s2 = inlined_call_operand.vmem [shape: f32[1,128], index: 2, kind: input, shape index: {}]
  %s3 = inlined_call_operand.hbm [shape: f32[128,128], index: 3, kind: output, shape index: {}]
  %s4 = sld [smem:[#allocation0]]
  $region30: #{tpu_custom_call.1} parent=0
    _
  %s6 = ssub.s32 1, %s4
  %s7 = scalar_select 0, %s6, %s4
  $region1: #{tpu_custom_call.1} parent=0
    #allocation2 [shape = 'u8[65536]{0}', space=vmem, size = 0x10000, scoped, tag = 'input window, operand 0, single buffered']
    #allocation3 [shape = 's32[1]{0}', space=sflag, size = 0x4, scoped, tag = 'scoped memory for tpu_custom_call.1']
    #allocation4 [shape = 's32[1]{0}', space=sflag, size = 0x4, scoped, tag = 'scoped memory for tpu_custom_call.1']
    #allocation5 [shape = 'u8[65536]{0}', space=vmem, size = 0x10000, scoped, tag = 'input window, operand 1, single buffered']
    #allocation6 [shape = 's32[1]{0}', space=sflag, size = 0x4, scoped, tag = 'scoped memory for tpu_custom_call.1']
    #allocation7 [shape = 'u8[65536]{0}', space=vmem, size = 0x10000, scoped, tag = 'output window, operand 0, single buffered']
    %8 = vsyncpa [#allocation3], 0
    %9 = vsyncpa [#allocation6], 0
    %10 = vsyncpa [#allocation4], 0
    // Predicated region
    $region2: #{tpu_custom_call.1} parent=1 // pred_check
      _
    $region3: #{tpu_custom_call.1} parent=1 // pred_check_branch
      %12 = sbr.rel (0) target = $region5
    $region4: #{tpu_custom_call.1} parent=1 // pred_region
      %s14 = ssub.s32 2048, 2048
      %15 = vsyncadd [#allocation3], %s14
      %s16 = sshll.u32 [#allocation2], 4
      %s17 = int_to_ptr.vmem [resolvable:$true] %s16
      %22 = dma.hbm_to_vmem [thread:$0]  %s0, 2048, %s17, [#allocation3], 128, 128, 8
    $region5: #{tpu_custom_call.1} parent=1 // pred_fallthru
      _
    // Predicated region
    $region6: #{tpu_custom_call.1} parent=1 // pred_check
      _
    $region7: #{tpu_custom_call.1} parent=1 // pred_check_branch
      %24 = sbr.rel (0) target = $region9
    $region8: #{tpu_custom_call.1} parent=1 // pred_region
      %s26 = ssub.s32 2048, 2048
      %27 = vsyncadd [#allocation6], %s26
      %s28 = sshll.u32 [#allocation5], 4
      %s29 = int_to_ptr.vmem [resolvable:$true] %s28
      %34 = dma.hbm_to_vmem [thread:$0]  %s1, 2048, %s29, [#allocation6], 128, 128, 8
    $region9: #{tpu_custom_call.1} parent=1 // pred_fallthru
      _
    // Predicated region
    $region10: #{tpu_custom_call.1} parent=1 // pred_check
      _
    $region11: #{tpu_custom_call.1} parent=1 // pred_check_branch
      %36 = sbr.rel (0) target = $region13
    $region12: #{tpu_custom_call.1} parent=1 // pred_region
      _
    $region13: #{tpu_custom_call.1} parent=1 // pred_fallthru
      _
    // Predicated region
    $region14: #{tpu_custom_call.1} parent=1 // pred_check
      _
    $region15: #{tpu_custom_call.1} parent=1 // pred_check_branch
      %38 = sbr.rel (0) target = $region17
    $region16: #{tpu_custom_call.1} parent=1 // pred_region
      %39 = dma.done [#allocation3], 2048
    $region17: #{tpu_custom_call.1} parent=1 // pred_fallthru
      _
    // Predicated region
    $region18: #{tpu_custom_call.1} parent=1 // pred_check
      _
    $region19: #{tpu_custom_call.1} parent=1 // pred_check_branch
      %41 = sbr.rel (0) target = $region21
    $region20: #{tpu_custom_call.1} parent=1 // pred_region
      %42 = dma.done [#allocation6], 2048
    $region21: #{tpu_custom_call.1} parent=1 // pred_fallthru
      _
    %v43 = vld [vmem:[#allocation2] sm:$0xff]
    %v44 = vld [vmem:[#allocation2 + $0x8] sm:$0xff]
    %v45 = vld [vmem:[#allocation2 + $0x10] sm:$0xff]
    %v46 = vld [vmem:[#allocation2 + $0x18] sm:$0xff]
    %v47 = vld [vmem:[#allocation2 + $0x20] sm:$0xff]
    %v48 = vld [vmem:[#allocation2 + $0x28] sm:$0xff]
    %v49 = vld [vmem:[#allocation2 + $0x30] sm:$0xff]
    %v50 = vld [vmem:[#allocation2 + $0x38] sm:$0xff]
    %v51 = vld [vmem:[#allocation2 + $0x40] sm:$0xff]
    %v52 = vld [vmem:[#allocation2 + $0x48] sm:$0xff]
    %v53 = vld [vmem:[#allocation2 + $0x50] sm:$0xff]
    %v54 = vld [vmem:[#allocation2 + $0x58] sm:$0xff]
    %v55 = vld [vmem:[#allocation2 + $0x60] sm:$0xff]
    %v56 = vld [vmem:[#allocation2 + $0x68] sm:$0xff]
    %v57 = vld [vmem:[#allocation2 + $0x70] sm:$0xff]
    %v58 = vld [vmem:[#allocation2 + $0x78] sm:$0xff]
    %v59 = vld [vmem:[#allocation5] sm:$0xff]
    %v60 = vld [vmem:[#allocation5 + $0x8] sm:$0xff]
    %v61 = vld [vmem:[#allocation5 + $0x10] sm:$0xff]
    %v62 = vld [vmem:[#allocation5 + $0x18] sm:$0xff]
    %v63 = vld [vmem:[#allocation5 + $0x20] sm:$0xff]
    %v64 = vld [vmem:[#allocation5 + $0x28] sm:$0xff]
    %v65 = vld [vmem:[#allocation5 + $0x30] sm:$0xff]
    %v66 = vld [vmem:[#allocation5 + $0x38] sm:$0xff]
    %v67 = vld [vmem:[#allocation5 + $0x40] sm:$0xff]
    %v68 = vld [vmem:[#allocation5 + $0x48] sm:$0xff]
    %v69 = vld [vmem:[#allocation5 + $0x50] sm:$0xff]
    %v70 = vld [vmem:[#allocation5 + $0x58] sm:$0xff]
    %v71 = vld [vmem:[#allocation5 + $0x60] sm:$0xff]
    %v72 = vld [vmem:[#allocation5 + $0x68] sm:$0xff]
    %v73 = vld [vmem:[#allocation5 + $0x70] sm:$0xff]
    %v74 = vld [vmem:[#allocation5 + $0x78] sm:$0xff]
    %v75 = vld [vmem:[%s2] sm:$0x1]
    %v77 = vlaneseq
    %v78 = vshrl.u32 %v77, 7
    %v79 = vsub.s32 0, %v78
    %v80 = vrot.slane %v75, %v79
    %82 = vmatprep.subr.mxu0 0.0
    %83 = vmatpush1.msra.mxu0 %v59
    %84 = vmatprep.subr.mxu0 0.0
    %85 = vmatpush1.msra.mxu0 %v60
    %86 = vmatprep.subr.mxu0 0.0
    %87 = vmatpush1.msra.mxu0 %v61
    %88 = vmatprep.subr.mxu0 0.0
    %89 = vmatpush1.msra.mxu0 %v62
    %90 = vmatprep.subr.mxu0 0.0
    %91 = vmatpush1.msra.mxu0 %v63
    %92 = vmatprep.subr.mxu0 0.0
    %93 = vmatpush1.msra.mxu0 %v64
    %94 = vmatprep.subr.mxu0 0.0
    %95 = vmatpush1.msra.mxu0 %v65
    %96 = vmatprep.subr.mxu0 0.0
    %97 = vmatpush1.msra.mxu0 %v66
    %98 = vmatprep.subr.mxu0 0.0
    %99 = vmatpush1.msra.mxu0 %v67
    %100 = vmatprep.subr.mxu0 0.0
    %101 = vmatpush1.msra.mxu0 %v68
    %102 = vmatprep.subr.mxu0 0.0
    %103 = vmatpush1.msra.mxu0 %v69
    %104 = vmatprep.subr.mxu0 0.0
    %105 = vmatpush1.msra.mxu0 %v70
    %106 = vmatprep.subr.mxu0 0.0
    %107 = vmatpush1.msra.mxu0 %v71
    %108 = vmatprep.subr.mxu0 0.0
    %109 = vmatpush1.msra.mxu0 %v72
    %110 = vmatprep.subr.mxu0 0.0
    %111 = vmatpush1.msra.mxu0 %v73
    %112 = vmatprep.subr.mxu0 0.0
    %113 = vmatpush1.msra.mxu0 %v74
    %114 = vmatprep.subr.mxu0 0.0
    %115 = vmatpush1.msra.mxu0 0.0
    %116 = vmatprep.subr.mxu0 0.0
    %117 = vmatpush1.msra.mxu0 0.0
    %118 = vmatprep.subr.mxu0 0.0
    %119 = vmatpush1.msra.mxu0 0.0
    %120 = vmatprep.subr.mxu0 0.0
    %121 = vmatpush1.msra.mxu0 0.0
    %122 = vmatprep.subr.mxu0 0.0
    %123 = vmatpush1.msra.mxu0 0.0
    %124 = vmatprep.subr.mxu0 0.0
    %125 = vmatpush1.msra.mxu0 0.0
    %126 = vmatprep.subr.mxu0 0.0
    %127 = vmatpush1.msra.mxu0 0.0
    %128 = vmatprep.subr.mxu0 0.0
    %129 = vmatpush1.msra.mxu0 0.0
    %130 = vmatprep.subr.mxu0 0.0
    %131 = vmatpush1.msra.mxu0 0.0
    %132 = vmatprep.subr.mxu0 0.0
    %133 = vmatpush1.msra.mxu0 0.0
    %134 = vmatprep.subr.mxu0 0.0
    %135 = vmatpush1.msra.mxu0 0.0
    %136 = vmatprep.subr.mxu0 0.0
    %137 = vmatpush1.msra.mxu0 0.0
    %138 = vmatprep.subr.mxu0 0.0
    %139 = vmatpush1.msra.mxu0 0.0
    %140 = vmatprep.subr.mxu0 0.0
    %141 = vmatpush1.msra.mxu0 0.0
    %142 = vmatprep.subr.mxu0 0.0
    %143 = vmatpush1.msra.mxu0 0.0
    %144 = vmatprep.subr.mxu0 0.0
    %145 = vmatpush1.msra.mxu0 0.0
    %146 = vmatprep.mubr.f32.mxu0 0.0
    %147 = vmatmul.mubr.f32.gmra.mrb[0].mxu0 %v43
    %v148 = vpop.f32.mrb[0].mxu0
    %v149 = vadd.f32 %v80, %v148
    %v150 = vpop.f32.mrb[0].mxu0
    %151 = vmatprep.mubr.f32.mxu0 0.0
    %152 = vmatmul.mubr.f32.gmra.mrb[0].mxu0 %v44
    %v153 = vpop.f32.mrb[0].mxu0
    %v154 = vadd.f32 %v80, %v153
    %v155 = vpop.f32.mrb[0].mxu0
    %156 = vmatprep.mubr.f32.mxu0 0.0
    %157 = vmatmul.mubr.f32.gmra.mrb[0].mxu0 %v45
    %v158 = vpop.f32.mrb[0].mxu0
    %v159 = vadd.f32 %v80, %v158
    %v160 = vpop.f32.mrb[0].mxu0
    %161 = vmatprep.mubr.f32.mxu0 0.0
    %162 = vmatmul.mubr.f32.gmra.mrb[0].mxu0 %v46
    %v163 = vpop.f32.mrb[0].mxu0
    %v164 = vadd.f32 %v80, %v163
    %v165 = vpop.f32.mrb[0].mxu0
    %166 = vmatprep.mubr.f32.mxu0 0.0
    %167 = vmatmul.mubr.f32.gmra.mrb[0].mxu0 %v47
    %v168 = vpop.f32.mrb[0].mxu0
    %v169 = vadd.f32 %v80, %v168
    %v170 = vpop.f32.mrb[0].mxu0
    %171 = vmatprep.mubr.f32.mxu0 0.0
    %172 = vmatmul.mubr.f32.gmra.mrb[0].mxu0 %v48
    %v173 = vpop.f32.mrb[0].mxu0
    %v174 = vadd.f32 %v80, %v173
    %v175 = vpop.f32.mrb[0].mxu0
    %176 = vmatprep.mubr.f32.mxu0 0.0
    %177 = vmatmul.mubr.f32.gmra.mrb[0].mxu0 %v49
    %v178 = vpop.f32.mrb[0].mxu0
    %v179 = vadd.f32 %v80, %v178
    %v180 = vpop.f32.mrb[0].mxu0
    %181 = vmatprep.mubr.f32.mxu0 0.0
    %182 = vmatmul.mubr.f32.gmra.mrb[0].mxu0 %v50
    %v183 = vpop.f32.mrb[0].mxu0
    %v184 = vadd.f32 %v80, %v183
    %v185 = vpop.f32.mrb[0].mxu0
    %186 = vmatprep.mubr.f32.mxu0 0.0
    %187 = vmatmul.mubr.f32.gmra.mrb[0].mxu0 %v51
    %v188 = vpop.f32.mrb[0].mxu0
    %v189 = vadd.f32 %v80, %v188
    %v190 = vpop.f32.mrb[0].mxu0
    %191 = vmatprep.mubr.f32.mxu0 0.0
    %192 = vmatmul.mubr.f32.gmra.mrb[0].mxu0 %v52
    %v193 = vpop.f32.mrb[0].mxu0
    %v194 = vadd.f32 %v80, %v193
    %v195 = vpop.f32.mrb[0].mxu0
    %196 = vmatprep.mubr.f32.mxu0 0.0
    %197 = vmatmul.mubr.f32.gmra.mrb[0].mxu0 %v53
    %v198 = vpop.f32.mrb[0].mxu0
    %v199 = vadd.f32 %v80, %v198
    %v200 = vpop.f32.mrb[0].mxu0
    %201 = vmatprep.mubr.f32.mxu0 0.0
    %202 = vmatmul.mubr.f32.gmra.mrb[0].mxu0 %v54
    %v203 = vpop.f32.mrb[0].mxu0
    %v204 = vadd.f32 %v80, %v203
    %v205 = vpop.f32.mrb[0].mxu0
    %206 = vmatprep.mubr.f32.mxu0 0.0
    %207 = vmatmul.mubr.f32.gmra.mrb[0].mxu0 %v55
    %v208 = vpop.f32.mrb[0].mxu0
    %v209 = vadd.f32 %v80, %v208
    %v210 = vpop.f32.mrb[0].mxu0
    %211 = vmatprep.mubr.f32.mxu0 0.0
    %212 = vmatmul.mubr.f32.gmra.mrb[0].mxu0 %v56
    %v213 = vpop.f32.mrb[0].mxu0
    %v214 = vadd.f32 %v80, %v213
    %v215 = vpop.f32.mrb[0].mxu0
    %216 = vmatprep.mubr.f32.mxu0 0.0
    %217 = vmatmul.mubr.f32.gmra.mrb[0].mxu0 %v57
    %v218 = vpop.f32.mrb[0].mxu0
    %v219 = vadd.f32 %v80, %v218
    %v220 = vpop.f32.mrb[0].mxu0
    %221 = vmatprep.mubr.f32.mxu0 0.0
    %222 = vmatmul.mubr.f32.gmra.mrb[0].mxu0 %v58
    %v223 = vpop.f32.mrb[0].mxu0
    %v224 = vadd.f32 %v80, %v223
    %v225 = vpop.f32.mrb[0].mxu0
    %226 = vdwg.mxu0
    %227 = vst [vmem:[#allocation7] sm:$0xff] %v149
    %228 = vst [vmem:[#allocation7 + $0x8] sm:$0xff] %v154
    %229 = vst [vmem:[#allocation7 + $0x10] sm:$0xff] %v159
    %230 = vst [vmem:[#allocation7 + $0x18] sm:$0xff] %v164
    %231 = vst [vmem:[#allocation7 + $0x20] sm:$0xff] %v169
    %232 = vst [vmem:[#allocation7 + $0x28] sm:$0xff] %v174
    %233 = vst [vmem:[#allocation7 + $0x30] sm:$0xff] %v179
    %234 = vst [vmem:[#allocation7 + $0x38] sm:$0xff] %v184
    %235 = vst [vmem:[#allocation7 + $0x40] sm:$0xff] %v189
    %236 = vst [vmem:[#allocation7 + $0x48] sm:$0xff] %v194
    %237 = vst [vmem:[#allocation7 + $0x50] sm:$0xff] %v199
    %238 = vst [vmem:[#allocation7 + $0x58] sm:$0xff] %v204
    %239 = vst [vmem:[#allocation7 + $0x60] sm:$0xff] %v209
    %240 = vst [vmem:[#allocation7 + $0x68] sm:$0xff] %v214
    %241 = vst [vmem:[#allocation7 + $0x70] sm:$0xff] %v219
    %242 = vst [vmem:[#allocation7 + $0x78] sm:$0xff] %v224
    // Predicated region
    $region22: #{tpu_custom_call.1} parent=1 // pred_check
      _
    $region23: #{tpu_custom_call.1} parent=1 // pred_check_branch
      %244 = sbr.rel (0) target = $region25
    $region24: #{tpu_custom_call.1} parent=1 // pred_region
      %s246 = ssub.s32 2048, 2048
      %247 = vsyncadd [#allocation4], %s246
      %s248 = sshll.u32 [#allocation7], 4
      %s249 = int_to_ptr.vmem [resolvable:$true] %s248
      %254 = dma.vmem_to_hbm [thread:$0]  %s249, 2048, %s3, [#allocation4], 128, 128, 8
    $region25: #{tpu_custom_call.1} parent=1 // pred_fallthru
      _
    // Predicated region
    $region26: #{tpu_custom_call.1} parent=1 // pred_check
      _
    $region27: #{tpu_custom_call.1} parent=1 // pred_check_branch
      %256 = sbr.rel (0) target = $region29
    $region28: #{tpu_custom_call.1} parent=1 // pred_region
      %257 = dma.done [#allocation4], 2048
    $region29: #{tpu_custom_call.1} parent=1 // pred_fallthru
      _
    %258 = vsyncpa [#allocation3], 1
    %259 = vsyncpa [#allocation6], 1
    %260 = vsyncpa [#allocation4], 1

</llo_original>
